<compile_context>
chip_gen: v7x
topology: tpu7x:2x2x1
jax: 0.10.0
libtpu: 0.0.40
codegen_flags: <defaults>
</compile_context>

<pallas_src>
import jax
import jax.numpy as jnp
from jax import lax
from jax.experimental import pallas as pl
from jax.experimental.pallas import tpu as pltpu


# ---------------------------------------------------------------------------
# Tiling helpers
# ---------------------------------------------------------------------------

_TILE_FLOOR_BYTES = 4 << 20   # ~4 MiB input tile already hits ~85% of HBM BW
_NUM_CORES = 2                # v7x has 2 TCs; harmless on 1-TC v5e/v6e


def _vmem_limit_bytes():
    try:
        info = pltpu.get_tpu_info()
        vmem_physical = int(getattr(info, "vmem_capacity_bytes", 64 << 20))
    except Exception:
        vmem_physical = 64 << 20          # conservative (v7x-sized) fallback
    return min(max(vmem_physical - (16 << 20), 32 << 20), 100 << 20)


def _pick_tb(batch, per_b_bytes, tile_cap_bytes,
             tile_floor_bytes=_TILE_FLOOR_BYTES, num_cores=_NUM_CORES):
    """Batch-block size for the single-pass path.

    Picks the SMALLEST block whose tile reaches the floor (longest grid =>
    best pipelining), preferring grids that are a multiple of the core count
    and deep enough (>= 2 steps/core).  Returns None when even tb=1 does not
    fit the VMEM budget (caller switches to the two-phase fallback)."""
    fit = [d for d in range(1, batch + 1)
           if batch % d == 0 and d * per_b_bytes <= tile_cap_bytes]
    if not fit:
        return None

    def grid_pref(d):
        g = batch // d
        return ((g % num_cores == 0), g >= 2 * num_cores)

    floored = [d for d in fit if d * per_b_bytes >= tile_floor_bytes]
    if floored:
        # Longest grid among tiles that amortize the ~0.35us per-step cost.
        return max(floored, key=lambda d: grid_pref(d) + (batch // d,))
    # Whole problem is tiny: keep the grid balanced/deep, otherwise make the
    # tile as large as possible.
    return max(fit, key=lambda d: grid_pref(d) + (d,))


# ---------------------------------------------------------------------------
# Single-pass fused kernel (pool -> MLP -> gate -> scale)
# ---------------------------------------------------------------------------

def _make_se_kernel(inv_hw):
    """inv_hw = 1 / (H*W)."""

    def _se_kernel(x_ref, w1_ref, w2_ref, o_ref):
        # 1) squeeze: exact mean = sum * 1/HW (no spatial padding anywhere).
        pooled = jnp.sum(x_ref[...].astype(jnp.float32), axis=-1) * inv_hw   # (TB, C)
        # 2) excitation MLP.  The hidden axis of w1/w2 is zero-padded to a
        #    full 128-lane group in the wrapper: padded columns yield
        #    SiLU(0)=0 and the padded rows of w2 are zero, so the math is
        #    unchanged while the narrow-lane relayout disappears.
        h = jnp.dot(pooled, w1_ref[...], preferred_element_type=jnp.float32)  # (TB, Crp)
        h = h * jax.nn.sigmoid(h)                                             # SiLU
        z = jnp.dot(h, w2_ref[...], preferred_element_type=jnp.float32)       # (TB, C)
        s = jax.nn.sigmoid(z)                                                 # (TB, C)
        # 3) re-read the input tile at the point of use (does not keep the
        #    multi-MiB tile live across the MLP -> lower register pressure)
        #    and scale by the per-channel gate broadcast over the lane axis.
        o_ref[...] = (x_ref[...].astype(jnp.float32) * s[:, :, None]).astype(o_ref.dtype)

    return _se_kernel


# ---------------------------------------------------------------------------
# Two-phase fallback (spatially chunked) for VMEM-constrained shapes
# ---------------------------------------------------------------------------

def _make_pool_kernel(hw, chunk):
    def _pool_kernel(x_ref, sum_ref):
        j = pl.program_id(1)

        @pl.when(j == 0)
        def _():
            sum_ref[...] = jnp.zeros_like(sum_ref)

        x = x_ref[...].astype(jnp.float32)                      # (1, C, chunk)
        # Mask the cdiv tail (contents of a partial boundary block are
        # unspecified).
        lane = lax.broadcasted_iota(jnp.int32, x.shape, 2) + j * chunk
        x = jnp.where(lane < hw, x, 0.0)
        sum_ref[...] += jnp.sum(x, axis=-1, keepdims=True)      # (1, C, 1)

    return _pool_kernel


def _scale_kernel(x_ref, g_ref, o_ref):
    # (1, C, chunk) * (1, C, 1) -> (1, C, chunk)
    o_ref[...] = (x_ref[...].astype(jnp.float32) * g_ref[...]).astype(o_ref.dtype)


def _se_two_phase(x_flat, w1, w2, inv_hw, tile_cap_bytes, vmem_limit):
    B, C, HW = x_flat.shape
    itemsize = jnp.dtype(x_flat.dtype).itemsize

    max_elems = max(128, tile_cap_bytes // (C * itemsize))
    chunk = max(128, (max_elems // 128) * 128)                  # lane-dense chunk
    chunk = min(chunk, ((HW + 127) // 128) * 128)
    n_chunks = pl.cdiv(HW, chunk)

    # Phase 0: per-(B, C) spatial sums.
    sums = pl.pallas_call(
        _make_pool_kernel(HW, chunk),
        out_shape=jax.ShapeDtypeStruct((B, C, 1), jnp.float32),
        grid_spec=pltpu.PrefetchScalarGridSpec(
            num_scalar_prefetch=0,
            grid=(B, n_chunks),
            in_specs=[pl.BlockSpec((1, C, chunk), lambda b, j: (b, 0, j))],
            out_specs=pl.BlockSpec((1, C, 1), lambda b, j: (b, 0, 0)),
        ),
        compiler_params=pltpu.CompilerParams(
            dimension_semantics=("parallel", "arbitrary"),
            vmem_limit_bytes=vmem_limit,
        ),
    )(x_flat)

    # Tiny (B x C) excitation MLP as plain XLA between the two phases; its
    # cost is negligible next to the 3N HBM traffic of this path.
    pooled = sums[:, :, 0] * inv_hw
    h = pooled @ w1.astype(jnp.float32)
    h = h * jax.nn.sigmoid(h)                                   # SiLU
    gate = jax.nn.sigmoid(h @ w2.astype(jnp.float32))           # (B, C)
    gate = gate[:, :, None].astype(jnp.float32)                 # (B, C, 1)

    # Phase 1: rescale every spatial chunk by the per-channel gate.
    out_flat = pl.pallas_call(
        _scale_kernel,
        out_shape=jax.ShapeDtypeStruct((B, C, HW), x_flat.dtype),
        grid_spec=pltpu.PrefetchScalarGridSpec(
            num_scalar_prefetch=0,
            grid=(B, n_chunks),
            in_specs=[pl.BlockSpec((1, C, chunk), lambda b, j: (b, 0, j)),
                      pl.BlockSpec((1, C, 1), lambda b, j: (b, 0, 0))],
            out_specs=pl.BlockSpec((1, C, chunk), lambda b, j: (b, 0, j)),
        ),
        compiler_params=pltpu.CompilerParams(
            dimension_semantics=("parallel", "parallel"),
            vmem_limit_bytes=vmem_limit,
        ),
    )(x_flat, gate)
    return out_flat


# ---------------------------------------------------------------------------
# Public wrapper
# ---------------------------------------------------------------------------

def se_layer(x, w1, w2, *, _max_tile_bytes=None):
    """SELayer forward.  x: (B, C, H, W); w1: (C, C//r); w2: (C//r, C).

    Matches the PyTorch module: global avg-pool -> Linear (no bias) -> SiLU ->
    Linear (no bias) -> Sigmoid -> channel-wise scale of x."""
    B, C, H, W = x.shape
    HW = H * W
    Cr = w1.shape[1]
    itemsize = jnp.dtype(x.dtype).itemsize
    inv_hw = 1.0 / HW

    x_flat = x.reshape(B, C, HW)                 # no HBM-side padding/slicing

    vmem_limit = _vmem_limit_bytes()
    # in + out blocks are double-buffered (4 tiles) + weights + headroom.
    tile_cap = vmem_limit // 5
    if _max_tile_bytes is not None:              # test hook / manual override
        tile_cap = min(tile_cap, int(_max_tile_bytes))

    per_b_bytes = C * HW * itemsize
    tb = _pick_tb(B, per_b_bytes, tile_cap)

    if tb is None:
        # Even one batch element does not fit the VMEM budget (e.g. large
        # feature maps on v7x's 64 MiB): two-phase spatially-chunked schedule.
        out_flat = _se_two_phase(x_flat, w1, w2, inv_hw, tile_cap, vmem_limit)
        return out_flat.reshape(B, C, H, W)

    # Zero-pad the excitation weights so the hidden width is a full 128-lane
    # group (reduction=16 typically gives Cr << 128).  Padded columns/rows are
    # zero, so results are bit-for-bit in f32.
    Crp = max(128, ((Cr + 127) // 128) * 128)
    if Crp != Cr:
        w1 = jnp.pad(w1, ((0, 0), (0, Crp - Cr)))
        w2 = jnp.pad(w2, ((0, Crp - Cr), (0, 0)))

    grid = (B // tb,)
    out_flat = pl.pallas_call(
        _make_se_kernel(inv_hw),
        out_shape=jax.ShapeDtypeStruct((B, C, HW), x.dtype),
        grid_spec=pltpu.PrefetchScalarGridSpec(
            num_scalar_prefetch=0,
            grid=grid,
            in_specs=[
                pl.BlockSpec((tb, C, HW), lambda b: (b, 0, 0)),
                pl.BlockSpec((C, Crp), lambda b: (0, 0)),
                pl.BlockSpec((Crp, C), lambda b: (0, 0)),
            ],
            out_specs=pl.BlockSpec((tb, C, HW), lambda b: (b, 0, 0)),
        ),
        compiler_params=pltpu.CompilerParams(
            dimension_semantics=("parallel",),
            vmem_limit_bytes=vmem_limit,
        ),
    )(x_flat, w1, w2)

    # NOTE: if the surrounding model tolerates bf16 activations, passing bf16
    # x/out halves HBM traffic (~2x on this bandwidth-bound op); the kernel
    # already keeps the pool/MLP/gate math in f32 internally.
    # TODO(synk): optionally expose input_output_aliases for donated x on
    # memory-tight v5e deployments (no bandwidth change, saves one HBM buffer).
    return out_flat.reshape(B, C, H, W)


# ---------------------------------------------------------------------------
# Reference + self-test
# ---------------------------------------------------------------------------

def _reference(x, w1, w2):
    # Pure-JAX mirror of the PyTorch forward.
    y = jnp.mean(x, axis=(2, 3))                 # (B, C)
    h = y @ w1
    h = h * jax.nn.sigmoid(h)                    # SiLU
    z = jax.nn.sigmoid(h @ w2)                   # (B, C)
    return x * z[:, :, None, None]


if __name__ == "__main__":
    B, C, H, W = 2, 64, 16, 16
    reduction = 16
    Cr = C // reduction

    key = jax.random.PRNGKey(0)
    kx, k1, k2 = jax.random.split(key, 3)

    x = jax.random.normal(kx, (B, C, H, W), dtype=jnp.float32)
    # PyTorch Linear stores weight as (out, in); kept here as (in, out) so the
    # kernel uses plain y @ w (both Linear layers are bias-free, per the spec).
    w1 = (jax.random.uniform(k1, (C, Cr), dtype=jnp.float32) - 0.5) * (2.0 / jnp.sqrt(C))
    w2 = (jax.random.uniform(k2, (Cr, C), dtype=jnp.float32) - 0.5) * (2.0 / jnp.sqrt(Cr))

    ref = _reference(x, w1, w2)

    out = se_layer(x, w1, w2)
    jax.block_until_ready(out)
    assert jnp.allclose(out, ref, atol=1e-5, rtol=1e-5), "single-pass mismatch"

    # Also exercise the two-phase (VMEM-constrained v7x) fallback path by
    # forcing a tiny tile budget.
    out2 = se_layer(x, w1, w2, _max_tile_bytes=32 << 10)
    jax.block_until_ready(out2)
    assert jnp.allclose(out2, ref, atol=1e-5, rtol=1e-5), "two-phase mismatch"

    print("KERNEL_OK")
</pallas_src>

<mosaic_0001>
module attributes {stable_mosaic.version = 11 : i64} {
  func.func @_se_kernel(%arg0: i32, %arg1: memref<1x64x256xf32, #tpu.memory_space<vmem>>, %arg2: memref<64x128xf32, #tpu.memory_space<vmem>>, %arg3: memref<128x64xf32, #tpu.memory_space<vmem>>, %arg4: memref<1x64x256xf32, #tpu.memory_space<vmem>>) attributes {dimension_semantics = [#tpu.dimension_semantics<parallel>], iteration_bounds = array<i64: 2>, scalar_prefetch = 0 : i64, scratch_operands = 0 : i64, tpu.core_type = #tpu.core_type<tc>, window_params = [{transform_indices = @transform_0, window_bounds = array<i64: 1, 64, 256>}, {pipeline_mode = #tpu.pipeline_mode<synchronous>, transform_indices = @transform_1, window_bounds = array<i64: 64, 128>}, {pipeline_mode = #tpu.pipeline_mode<synchronous>, transform_indices = @transform_2, window_bounds = array<i64: 128, 64>}, {transform_indices = @transform_3, window_bounds = array<i64: 1, 64, 256>}]} {
    %c0 = arith.constant 0 : index
    %c0_0 = arith.constant 0 : index
    %c0_1 = arith.constant 0 : index
    %0 = vector.load %arg1[%c0, %c0_0, %c0_1] : memref<1x64x256xf32, #tpu.memory_space<vmem>>, vector<1x64x256xf32>
    %cst = arith.constant dense<0.000000e+00> : vector<1x64xf32>
    %1 = vector.multi_reduction <add>, %0, %cst [2] : vector<1x64x256xf32> to vector<1x64xf32>
    %cst_2 = arith.constant 3.906250e-03 : f32
    %2 = vector.broadcast %cst_2 : f32 to vector<1x64xf32>
    %3 = arith.mulf %1, %2 : vector<1x64xf32>
    %c0_3 = arith.constant 0 : index
    %c0_4 = arith.constant 0 : index
    %4 = vector.load %arg2[%c0_3, %c0_4] : memref<64x128xf32, #tpu.memory_space<vmem>>, vector<64x128xf32>
    %cst_5 = arith.constant dense<0.000000e+00> : vector<1x128xf32>
    %5 = tpu.matmul %3, %4, %cst_5 {dimension_numbers = #tpu.dot_dimension_numbers<[1], [0], [0], [1], [0, 0, 1, 1], [], []>} : vector<1x64xf32>, vector<64x128xf32>, vector<1x128xf32> -> vector<1x128xf32>
    %6 = arith.negf %5 : vector<1x128xf32>
    %7 = math.exp %6 : vector<1x128xf32>
    %cst_6 = arith.constant 1.000000e+00 : f32
    %8 = vector.broadcast %cst_6 : f32 to vector<1x128xf32>
    %9 = arith.addf %8, %7 : vector<1x128xf32>
    %10 = arith.divf %8, %9 : vector<1x128xf32>
    %11 = arith.mulf %5, %10 : vector<1x128xf32>
    %c0_7 = arith.constant 0 : index
    %c0_8 = arith.constant 0 : index
    %12 = vector.load %arg3[%c0_7, %c0_8] : memref<128x64xf32, #tpu.memory_space<vmem>>, vector<128x64xf32>
    %cst_9 = arith.constant dense<0.000000e+00> : vector<1x64xf32>
    %13 = tpu.matmul %11, %12, %cst_9 {dimension_numbers = #tpu.dot_dimension_numbers<[1], [0], [0], [1], [0, 0, 1, 1], [], []>} : vector<1x128xf32>, vector<128x64xf32>, vector<1x64xf32> -> vector<1x64xf32>
    %14 = arith.negf %13 : vector<1x64xf32>
    %15 = math.exp %14 : vector<1x64xf32>
    %cst_10 = arith.constant 1.000000e+00 : f32
    %16 = vector.broadcast %cst_10 : f32 to vector<1x64xf32>
    %17 = arith.addf %16, %15 : vector<1x64xf32>
    %18 = arith.divf %16, %17 : vector<1x64xf32>
    %c0_11 = arith.constant 0 : index
    %c0_12 = arith.constant 0 : index
    %c0_13 = arith.constant 0 : index
    %19 = vector.load %arg1[%c0_11, %c0_12, %c0_13] : memref<1x64x256xf32, #tpu.memory_space<vmem>>, vector<1x64x256xf32>
    %20 = vector.shape_cast %18 : vector<1x64xf32> to vector<1x64x1xf32>
    %21 = vector.broadcast %20 : vector<1x64x1xf32> to vector<1x64x256xf32>
    %22 = arith.mulf %19, %21 : vector<1x64x256xf32>
    %c0_14 = arith.constant 0 : index
    %c0_15 = arith.constant 0 : index
    %c0_16 = arith.constant 0 : index
    %23 = vector.load %arg4[%c0_14, %c0_15, %c0_16] : memref<1x64x256xf32, #tpu.memory_space<vmem>>, vector<1x64x256xf32>
    tpu.vector_store %arg4[%c0_14, %c0_15, %c0_16], %22 {strides = array<i32>} : memref<1x64x256xf32, #tpu.memory_space<vmem>>, vector<1x64x256xf32>,
    return
  }
  func.func @transform_0(%arg0: i32) -> (i32, i32, i32) {
    %c0_i32 = arith.constant 0 : i32
    %c0_i32_0 = arith.constant 0 : i32
    %c0_i32_1 = arith.constant 0 : i32
    return %arg0, %c0_i32, %c0_i32_0 : i32, i32, i32
  }
  func.func @transform_1(%arg0: i32) -> (i32, i32) {
    %c0_i32 = arith.constant 0 : i32
    %c0_i32_0 = arith.constant 0 : i32
    %c0_i32_1 = arith.constant 0 : i32
    return %c0_i32, %c0_i32_0 : i32, i32
  }
  func.func @transform_2(%arg0: i32) -> (i32, i32) {
    %c0_i32 = arith.constant 0 : i32
    %c0_i32_0 = arith.constant 0 : i32
    %c0_i32_1 = arith.constant 0 : i32
    return %c0_i32, %c0_i32_0 : i32, i32
  }
  func.func @transform_3(%arg0: i32) -> (i32, i32, i32) {
    %c0_i32 = arith.constant 0 : i32
    %c0_i32_0 = arith.constant 0 : i32
    %c0_i32_1 = arith.constant 0 : i32
    return %arg0, %c0_i32, %c0_i32_0 : i32, i32, i32
  }
}

</mosaic_0001>

<llo_original>
// kernel: tpu_custom_call.1
$region0: #{tpu_custom_call.1}
  #allocation0 [shape = 'u32[]', space=smem, size = 0x4, offset = 0x4, fixed_abs, tag = 'smem constant byte address 0x4 - core index']
  #allocation1 [shape = 'u32[144,128]{1,0:T(1,128)}', space=vmem, size = 0x12000, scoped, tag = 'internal scratch']
  %s0 = inlined_call_operand.hbm [shape: f32[2,64,256], index: 0, kind: input, shape index: {}]
  %s1 = inlined_call_operand.vmem [shape: f32[64,128], index: 1, kind: input, shape index: {}]
  %s2 = inlined_call_operand.vmem [shape: f32[128,64], index: 2, kind: input, shape index: {}]
  %s3 = inlined_call_operand.hbm [shape: f32[2,64,256], index: 3, kind: output, shape index: {}]
  %s4 = sld [smem:[#allocation0]]
  $region49: #{tpu_custom_call.1} parent=0
    _
  %s6 = ssub.s32 1, %s4
  %s7 = scalar_select 0, %s6, %s4
  $region1: #{tpu_custom_call.1} parent=0
    #allocation2 [shape = 'u8[131072]{0}', space=vmem, size = 0x20000, scoped, tag = 'input window, operand 0']
    #allocation3 [shape = 's32[2]{0}', space=sflag, size = 0x8, scoped, tag = 'scoped memory for tpu_custom_call.1']
    #allocation4 [shape = 's32[2]{0}', space=sflag, size = 0x8, scoped, tag = 'scoped memory for tpu_custom_call.1']
    #allocation5 [shape = 'u8[131072]{0}', space=vmem, size = 0x20000, scoped, tag = 'output window, operand 0']
    %8 = vsyncpa [#allocation3], 0
    %s9 = scalar_lea.sflag [#allocation3], 1
    %10 = vsyncpa %s9, 0
    %11 = vsyncpa [#allocation4], 0
    %s12 = scalar_lea.sflag [#allocation4], 1
    %13 = vsyncpa %s12, 0
    loop: start=0, step=1, limit=4
    $region2: #{tpu_custom_call.1} parent=1 // loop_pre_header
      _
    $region3: #{tpu_custom_call.1} parent=1 // loop_header
      %s15 = sphi 0, %s19
      %p16 = scmp.ge.s32.totalorder %s15, 4
      %s25 = sphi 0, %s27
      %s28 = sphi 0, %s25
      %s29 = sphi 0, %s28
      %s45 = sphi 0, %s29
      %s49 = sphi 0, %s49
      %s51 = sphi 0, %s49
      %s52 = sphi 0, %s51
      %s66 = sphi 0, %s52
      %s70 = sphi 0, %s70
      %s72 = sphi 0, %s70
      %s73 = sphi 0, %s72
      %s87 = sphi 0, %s73
      %s93 = sphi 0, %s95
      %s96 = sphi 0, %s93
      %s97 = sphi 0, %s96
      %s113 = sphi 0, %s97
    $region4: #{tpu_custom_call.1} parent=1 // loop_header_branch
      %18 = sbr.rel (%p16) target = $region8
    $region5: #{tpu_custom_call.1} parent=1 // loop_body
      %s20 = ssub.s32 %s15, 1
      %s21 = ssub.s32 %s15, 2
      %s22 = sadd.s32 %s15, 1
      %s23 = ssub.s32 %s15, %s22
      %p24 = scmp.eq.s32.totalorder %s23, 0
      %s26 = sadd.s32 %s25, 1
      %s27 = scalar_select %p24, %s25, %s26
      %p30 = pneg %p24
      %p31 = scmp.eq.s32.totalorder %s15, 1
      %p32 = por %p30, %p31
      %p33 = scmp.ne.s32.totalorder %s25, %s28
      %p34 = scmp.eq.s32.totalorder %s15, 0
      %p35 = por %p33, %p34
      %p36 = scmp.ne.s32.totalorder %s25, %s28
      %p37 = scmp.eq.s32.totalorder %s20, 1
      %p38 = por %p36, %p37
      %p39 = scmp.ne.s32.totalorder %s28, %s29
      %p40 = scmp.eq.s32.totalorder %s20, 0
      %p41 = por %p39, %p40
      %p42 = scmp.ne.s32.totalorder %s28, %s29
      %p43 = scmp.eq.s32.totalorder %s21, 1
      %p44 = por %p42, %p43
      %p46 = scmp.ne.s32.totalorder %s29, %s45
      %p47 = scmp.eq.s32.totalorder %s21, 0
      %p48 = por %p46, %p47
      %s50 = sadd.s32 %s49, 1
      %p53 = scmp.eq.s32.totalorder %s15, 1
      %p54 = scmp.ne.s32.totalorder %s49, %s51
      %p55 = scmp.eq.s32.totalorder %s15, 0
      %p56 = por %p54, %p55
      %p57 = scmp.ne.s32.totalorder %s49, %s51
      %p58 = scmp.eq.s32.totalorder %s20, 1
      %p59 = por %p57, %p58
      %p60 = scmp.ne.s32.totalorder %s51, %s52
      %p61 = scmp.eq.s32.totalorder %s20, 0
      %p62 = por %p60, %p61
      %p63 = scmp.ne.s32.totalorder %s51, %s52
      %p64 = scmp.eq.s32.totalorder %s21, 1
      %p65 = por %p63, %p64
      %p67 = scmp.ne.s32.totalorder %s52, %s66
      %p68 = scmp.eq.s32.totalorder %s21, 0
      %p69 = por %p67, %p68
      %s71 = sadd.s32 %s70, 1
      %p74 = scmp.eq.s32.totalorder %s15, 1
      %p75 = scmp.ne.s32.totalorder %s70, %s72
      %p76 = scmp.eq.s32.totalorder %s15, 0
      %p77 = por %p75, %p76
      %p78 = scmp.ne.s32.totalorder %s70, %s72
      %p79 = scmp.eq.s32.totalorder %s20, 1
      %p80 = por %p78, %p79
      %p81 = scmp.ne.s32.totalorder %s72, %s73
      %p82 = scmp.eq.s32.totalorder %s20, 0
      %p83 = por %p81, %p82
      %p84 = scmp.ne.s32.totalorder %s72, %s73
      %p85 = scmp.eq.s32.totalorder %s21, 1
      %p86 = por %p84, %p85
      %p88 = scmp.ne.s32.totalorder %s73, %s87
      %p89 = scmp.eq.s32.totalorder %s21, 0
      %p90 = por %p88, %p89
      %s91 = ssub.s32 %s15, %s22
      %p92 = scmp.eq.s32.totalorder %s91, 0
      %s94 = sadd.s32 %s93, 1
      %s95 = scalar_select %p92, %s93, %s94
      %p98 = pneg %p92
      %p99 = scmp.eq.s32.totalorder %s15, 1
      %p100 = por %p98, %p99
      %p101 = scmp.ne.s32.totalorder %s93, %s96
      %p102 = scmp.eq.s32.totalorder %s15, 0
      %p103 = por %p101, %p102
      %p104 = scmp.ne.s32.totalorder %s93, %s96
      %p105 = scmp.eq.s32.totalorder %s20, 1
      %p106 = por %p104, %p105
      %p107 = scmp.ne.s32.totalorder %s96, %s97
      %p108 = scmp.eq.s32.totalorder %s20, 0
      %p109 = por %p107, %p108
      %p110 = scmp.ne.s32.totalorder %s96, %s97
      %p111 = scmp.eq.s32.totalorder %s21, 1
      %p112 = por %p110, %p111
      %p114 = scmp.ne.s32.totalorder %s97, %s113
      %p115 = scmp.eq.s32.totalorder %s21, 0
      %p116 = por %p114, %p115
      %p117 = scmp.le.s32.totalorder 1, %s15
      %p118 = scmp.lt.s32.totalorder %s15, 3
      %p119 = pnand %p117, %p118
      %p120 = pneg %p119
      // Predicated region
      $region9: #{tpu_custom_call.1} parent=5 // pred_check
        _
      $region10: #{tpu_custom_call.1} parent=5 // pred_check_branch
        %122 = sbr.rel (%p119) target = $region12
      $region11: #{tpu_custom_call.1} parent=5 // pred_region
        %s123 = ssub.s32 %s15, 1
        // Predicated region
        $region13: #{tpu_custom_call.1} parent=11 // pred_check
          %p124 = pneg %p62
        $region14: #{tpu_custom_call.1} parent=11 // pred_check_branch
          %126 = sbr.rel (%p124) target = $region16
        $region15: #{tpu_custom_call.1} parent=11 // pred_region
          _
        $region16: #{tpu_custom_call.1} parent=11 // pred_fallthru
          _
        // Predicated region
        $region17: #{tpu_custom_call.1} parent=11 // pred_check
          %p127 = pneg %p83
        $region18: #{tpu_custom_call.1} parent=11 // pred_check_branch
          %129 = sbr.rel (%p127) target = $region20
        $region19: #{tpu_custom_call.1} parent=11 // pred_region
          _
        $region20: #{tpu_custom_call.1} parent=11 // pred_fallthru
          _
      $region12: #{tpu_custom_call.1} parent=5 // pred_fallthru
        _
      %p130 = scmp.lt.s32.totalorder %s15, 2
      // Predicated region
      $region21: #{tpu_custom_call.1} parent=5 // pred_check
        %p131 = pneg %p130
      $region22: #{tpu_custom_call.1} parent=5 // pred_check_branch
        %133 = sbr.rel (%p131) target = $region24
      $region23: #{tpu_custom_call.1} parent=5 // pred_region
        // Predicated region
        $region25: #{tpu_custom_call.1} parent=23 // pred_check
          %p134 = pneg %p35
        $region26: #{tpu_custom_call.1} parent=23 // pred_check_branch
          %136 = sbr.rel (%p134) target = $region28
        $region27: #{tpu_custom_call.1} parent=23 // pred_region
          %s137 = sand.u32 %s25, 1
          %s138 = scalar_lea.sflag [#allocation3], %s137
          %s139 = sand.u32 %s25, 1
          %s140 = smul.addr %s139, 128
          %s141 = scalar_lea.vmem [#allocation2], %s140
          %s143 = ssub.s32 2048, 2048
          %144 = vsyncadd %s138, %s143
          %s145 = smul.addr %s15, 16
          %s146 = smul.addr %s145, 128
          %s147 = scalar_lea.hbm %s0, %s146
          %s148 = sshll.u32 %s141, 4
          %s149 = int_to_ptr.vmem [resolvable:$true] %s148
          %154 = dma.hbm_to_vmem [thread:$0]  %s147, 2048, %s149, %s138, 256, 256, 16
        $region28: #{tpu_custom_call.1} parent=23 // pred_fallthru
          _
      $region24: #{tpu_custom_call.1} parent=5 // pred_fallthru
        _
      %p155 = scmp.le.s32.totalorder 1, %s15
      %p156 = scmp.lt.s32.totalorder %s15, 3
      %p157 = pnand %p155, %p156
      %p158 = pneg %p157
      // Predicated region
      $region29: #{tpu_custom_call.1} parent=5 // pred_check
        _
      $region30: #{tpu_custom_call.1} parent=5 // pred_check_branch
        %160 = sbr.rel (%p157) target = $region32
      $region31: #{tpu_custom_call.1} parent=5 // pred_region
        %s161 = ssub.s32 %s15, 1
        %s162 = sand.u32 %s28, 1
        %s163 = scalar_lea.sflag [#allocation3], %s162
        %s164 = sand.u32 %s28, 1
        %s165 = smul.addr %s164, 128
        %s166 = scalar_lea.vmem [#allocation2], %s165
        // Predicated region
        $region33: #{tpu_custom_call.1} parent=31 // pred_check
          %p167 = pneg %p41
        $region34: #{tpu_custom_call.1} parent=31 // pred_check_branch
          %169 = sbr.rel (%p167) target = $region36
        $region35: #{tpu_custom_call.1} parent=31 // pred_region
          %170 = dma.done %s163, 2048
        $region36: #{tpu_custom_call.1} parent=31 // pred_fallthru
          _
        %s171 = sand.u32 %s28, 1
        %s172 = scalar_lea.sflag [#allocation3], %s171
        %s173 = sand.u32 %s28, 1
        %s174 = smul.addr %s173, 128
        %s175 = scalar_lea.vmem [#allocation2], %s174
        %p176 = pneg %p41
        %p177 = pneg %p38
        %p178 = pneg %p62
        %p179 = pneg %p59
        %p180 = pneg %p83
        %p181 = pneg %p80
        %p182 = pneg %p109
        %p183 = pneg %p106
        %s184 = sand.u32 %s96, 1
        %s185 = scalar_lea.sflag [#allocation4], %s184
        %s186 = sand.u32 %s96, 1
        %s187 = smul.addr %s186, 128
        %s188 = scalar_lea.vmem [#allocation5], %s187
        %v189 = vld [vmem:[%s166] sm:$0xff]
        %v190 = vld [vmem:[%s166 + $0x8] sm:$0xff]
        %v191 = vld [vmem:[%s166 + $0x10] sm:$0xff]
        %v192 = vld [vmem:[%s166 + $0x18] sm:$0xff]
        %v193 = vld [vmem:[%s166 + $0x20] sm:$0xff]
        %v194 = vld [vmem:[%s166 + $0x28] sm:$0xff]
        %v195 = vld [vmem:[%s166 + $0x30] sm:$0xff]
        %v196 = vld [vmem:[%s166 + $0x38] sm:$0xff]
        %v197 = vld [vmem:[%s166 + $0x40] sm:$0xff]
        %v198 = vld [vmem:[%s166 + $0x48] sm:$0xff]
        %v199 = vld [vmem:[%s166 + $0x50] sm:$0xff]
        %v200 = vld [vmem:[%s166 + $0x58] sm:$0xff]
        %v201 = vld [vmem:[%s166 + $0x60] sm:$0xff]
        %v202 = vld [vmem:[%s166 + $0x68] sm:$0xff]
        %v203 = vld [vmem:[%s166 + $0x70] sm:$0xff]
        %v204 = vld [vmem:[%s166 + $0x78] sm:$0xff]
        %v205 = vadd.f32 %v189, %v190
        %206 = vadd.xlane.f32.xlu0 %v205
        %v207 = vpop.xlane.xlu0 %206
        %v208 = vadd.f32 %v191, %v192
        %209 = vadd.xlane.f32.xlu0 %v208
        %v210 = vpop.xlane.xlu0 %209
        %v211 = vadd.f32 %v193, %v194
        %212 = vadd.xlane.f32.xlu0 %v211
        %v213 = vpop.xlane.xlu0 %212
        %v214 = vadd.f32 %v195, %v196
        %215 = vadd.xlane.f32.xlu0 %v214
        %v216 = vpop.xlane.xlu0 %215
        %v217 = vadd.f32 %v197, %v198
        %218 = vadd.xlane.f32.xlu0 %v217
        %v219 = vpop.xlane.xlu0 %218
        %v220 = vadd.f32 %v199, %v200
        %221 = vadd.xlane.f32.xlu0 %v220
        %v222 = vpop.xlane.xlu0 %221
        %v223 = vadd.f32 %v201, %v202
        %224 = vadd.xlane.f32.xlu0 %v223
        %v225 = vpop.xlane.xlu0 %224
        %v226 = vadd.f32 %v203, %v204
        %227 = vadd.xlane.f32.xlu0 %v226
        %v228 = vpop.xlane.xlu0 %227
        %v229 = vmul.f32 %v207, 0.00390625
        %v230 = vmul.f32 %v210, 0.00390625
        %v231 = vmul.f32 %v213, 0.00390625
        %v232 = vmul.f32 %v216, 0.00390625
        %v233 = vmul.f32 %v219, 0.00390625
        %v234 = vmul.f32 %v222, 0.00390625
        %v235 = vmul.f32 %v225, 0.00390625
        %v236 = vmul.f32 %v228, 0.00390625
        %v237 = vld [vmem:[%s1] sm:$0xff]
        %v238 = vld [vmem:[%s1 + $0x8] sm:$0xff]
        %v239 = vld [vmem:[%s1 + $0x10] sm:$0xff]
        %v240 = vld [vmem:[%s1 + $0x18] sm:$0xff]
        %v241 = vld [vmem:[%s1 + $0x20] sm:$0xff]
        %v242 = vld [vmem:[%s1 + $0x28] sm:$0xff]
        %v243 = vld [vmem:[%s1 + $0x30] sm:$0xff]
        %v244 = vld [vmem:[%s1 + $0x38] sm:$0xff]
        %v253 = vlaneseq
        %v254 = vand.u32 %v253, 127
        %v255 = vlaneseq
        %v256 = vshrl.u32 %v255, 7
        %v257 = vsub.s32 %v254, %v256
        %v258 = vrot.slane %v229, %v257
        %v259 = vadd.s32 %v254, 4294967288
        %v260 = vlaneseq
        %v261 = vshrl.u32 %v260, 7
        %v262 = vsub.s32 %v259, %v261
        %v263 = vrot.slane %v230, %v262
        %vm264 = vcmask 130112
        %v265 = vsel %vm264, %v263, %v258
        %v266 = vadd.s32 %v254, 4294967280
        %v267 = vlaneseq
        %v268 = vshrl.u32 %v267, 7
        %v269 = vsub.s32 %v266, %v268
        %v270 = vrot.slane %v231, %v269
        %vm271 = vcmask 195712
        %v272 = vsel %vm271, %v270, %v265
        %v273 = vadd.s32 %v254, 4294967272
        %v274 = vlaneseq
        %v275 = vshrl.u32 %v274, 7
        %v276 = vsub.s32 %v273, %v275
        %v277 = vrot.slane %v232, %v276
        %vm278 = vcmask 261312
        %v279 = vsel %vm278, %v277, %v272
        %v280 = vadd.s32 %v254, 4294967264
        %v281 = vlaneseq
        %v282 = vshrl.u32 %v281, 7
        %v283 = vsub.s32 %v280, %v282
        %v284 = vrot.slane %v233, %v283
        %vm285 = vcmask 326912
        %v286 = vsel %vm285, %v284, %v279
        %v287 = vadd.s32 %v254, 4294967256
        %v288 = vlaneseq
        %v289 = vshrl.u32 %v288, 7
        %v290 = vsub.s32 %v287, %v289
        %v291 = vrot.slane %v234, %v290
        %vm292 = vcmask 392512
        %v293 = vsel %vm292, %v291, %v286
        %v294 = vadd.s32 %v254, 4294967248
        %v295 = vlaneseq
        %v296 = vshrl.u32 %v295, 7
        %v297 = vsub.s32 %v294, %v296
        %v298 = vrot.slane %v235, %v297
        %vm299 = vcmask 458112
        %v300 = vsel %vm299, %v298, %v293
        %v301 = vadd.s32 %v254, 4294967240
        %v302 = vlaneseq
        %v303 = vshrl.u32 %v302, 7
        %v304 = vsub.s32 %v301, %v303
        %v305 = vrot.slane %v236, %v304
        %vm306 = vcmask 523712
        %v307 = vsel %vm306, %v305, %v300
        %vm308 = vcmask 523264
        %v309 = vsel %vm308, %v307, 0
        %311 = vmatprep.subr.mxu0 0.0
        %312 = vmatpush1.msra.mxu0 %v237
        %313 = vmatprep.subr.mxu0 0.0
        %314 = vmatpush1.msra.mxu0 %v238
        %315 = vmatprep.subr.mxu0 0.0
        %316 = vmatpush1.msra.mxu0 %v239
        %317 = vmatprep.subr.mxu0 0.0
        %318 = vmatpush1.msra.mxu0 %v240
        %319 = vmatprep.subr.mxu0 0.0
        %320 = vmatpush1.msra.mxu0 %v241
        %321 = vmatprep.subr.mxu0 0.0
        %322 = vmatpush1.msra.mxu0 %v242
        %323 = vmatprep.subr.mxu0 0.0
        %324 = vmatpush1.msra.mxu0 %v243
        %325 = vmatprep.subr.mxu0 0.0
        %326 = vmatpush1.msra.mxu0 %v244
        %327 = vmatprep.subr.mxu0 0.0
        %328 = vmatpush1.msra.mxu0 0.0
        %329 = vmatprep.subr.mxu0 0.0
        %330 = vmatpush1.msra.mxu0 0.0
        %331 = vmatprep.subr.mxu0 0.0
        %332 = vmatpush1.msra.mxu0 0.0
        %333 = vmatprep.subr.mxu0 0.0
        %334 = vmatpush1.msra.mxu0 0.0
        %335 = vmatprep.subr.mxu0 0.0
        %336 = vmatpush1.msra.mxu0 0.0
        %337 = vmatprep.subr.mxu0 0.0
        %338 = vmatpush1.msra.mxu0 0.0
        %339 = vmatprep.subr.mxu0 0.0
        %340 = vmatpush1.msra.mxu0 0.0
        %341 = vmatprep.subr.mxu0 0.0
        %342 = vmatpush1.msra.mxu0 0.0
        %343 = vmatprep.subr.mxu0 0.0
        %344 = vmatpush1.msra.mxu0 0.0
        %345 = vmatprep.subr.mxu0 0.0
        %346 = vmatpush1.msra.mxu0 0.0
        %347 = vmatprep.subr.mxu0 0.0
        %348 = vmatpush1.msra.mxu0 0.0
        %349 = vmatprep.subr.mxu0 0.0
        %350 = vmatpush1.msra.mxu0 0.0
        %351 = vmatprep.subr.mxu0 0.0
        %352 = vmatpush1.msra.mxu0 0.0
        %353 = vmatprep.subr.mxu0 0.0
        %354 = vmatpush1.msra.mxu0 0.0
        %355 = vmatprep.subr.mxu0 0.0
        %356 = vmatpush1.msra.mxu0 0.0
        %357 = vmatprep.subr.mxu0 0.0
        %358 = vmatpush1.msra.mxu0 0.0
        %359 = vmatprep.subr.mxu0 0.0
        %360 = vmatpush1.msra.mxu0 0.0
        %361 = vmatprep.subr.mxu0 0.0
        %362 = vmatpush1.msra.mxu0 0.0
        %363 = vmatprep.subr.mxu0 0.0
        %364 = vmatpush1.msra.mxu0 0.0
        %365 = vmatprep.subr.mxu0 0.0
        %366 = vmatpush1.msra.mxu0 0.0
        %367 = vmatprep.subr.mxu0 0.0
        %368 = vmatpush1.msra.mxu0 0.0
        %369 = vmatprep.subr.mxu0 0.0
        %370 = vmatpush1.msra.mxu0 0.0
        %371 = vmatprep.subr.mxu0 0.0
        %372 = vmatpush1.msra.mxu0 0.0
        %373 = vmatprep.subr.mxu0 0.0
        %374 = vmatpush1.msra.mxu0 0.0
        %375 = vmatprep.mubr.f32.mxu0 0.0
        %376 = vmatmul.mubr.f32.gmra.mrb[0].mxu0 %v309
        %v377 = vpop.f32.mrb[0].mxu0
        %v378 = vadd.f32 0.0, %v377
        %v379 = vpop.f32.mrb[0].mxu0
        %380 = vdwg.mxu0
        %v381 = vxor.u32 %v378, 2147483648
        %v382 = vmul.f32 %v381, 1.442695
        %v383 = vpow.pop %v382
        %v384 = vadd.f32 %v383, 1.0
        %v385 = vrcp.pop %v384
        %v386 = vmul.f32 1.0, %v385
        %v387 = vmul.f32 %v378, %v386
        %v388 = vld [vmem:[%s2] sm:$0xff]
        %v389 = vld [vmem:[%s2 + $0x8] sm:$0xff]
        %v390 = vld [vmem:[%s2 + $0x10] sm:$0xff]
        %v391 = vld [vmem:[%s2 + $0x18] sm:$0xff]
        %v392 = vld [vmem:[%s2 + $0x20] sm:$0xff]
        %v393 = vld [vmem:[%s2 + $0x28] sm:$0xff]
        %v394 = vld [vmem:[%s2 + $0x30] sm:$0xff]
        %v395 = vld [vmem:[%s2 + $0x38] sm:$0xff]
        %v396 = vld [vmem:[%s2 + $0x40] sm:$0xff]
        %v397 = vld [vmem:[%s2 + $0x48] sm:$0xff]
        %v398 = vld [vmem:[%s2 + $0x50] sm:$0xff]
        %v399 = vld [vmem:[%s2 + $0x58] sm:$0xff]
        %v400 = vld [vmem:[%s2 + $0x60] sm:$0xff]
        %v401 = vld [vmem:[%s2 + $0x68] sm:$0xff]
        %v402 = vld [vmem:[%s2 + $0x70] sm:$0xff]
        %v403 = vld [vmem:[%s2 + $0x78] sm:$0xff]
        %404 = vmatprep.subr.mxu0 0.0
        %405 = vmatpush1.msra.mxu0 %v388
        %406 = vmatprep.subr.mxu0 0.0
        %407 = vmatpush1.msra.mxu0 %v389
        %408 = vmatprep.subr.mxu0 0.0
        %409 = vmatpush1.msra.mxu0 %v390
        %410 = vmatprep.subr.mxu0 0.0
        %411 = vmatpush1.msra.mxu0 %v391
        %412 = vmatprep.subr.mxu0 0.0
        %413 = vmatpush1.msra.mxu0 %v392
        %414 = vmatprep.subr.mxu0 0.0
        %415 = vmatpush1.msra.mxu0 %v393
        %416 = vmatprep.subr.mxu0 0.0
        %417 = vmatpush1.msra.mxu0 %v394
        %418 = vmatprep.subr.mxu0 0.0
        %419 = vmatpush1.msra.mxu0 %v395
        %420 = vmatprep.subr.mxu0 0.0
        %421 = vmatpush1.msra.mxu0 %v396
        %422 = vmatprep.subr.mxu0 0.0
        %423 = vmatpush1.msra.mxu0 %v397
        %424 = vmatprep.subr.mxu0 0.0
        %425 = vmatpush1.msra.mxu0 %v398
        %426 = vmatprep.subr.mxu0 0.0
        %427 = vmatpush1.msra.mxu0 %v399
        %428 = vmatprep.subr.mxu0 0.0
        %429 = vmatpush1.msra.mxu0 %v400
        %430 = vmatprep.subr.mxu0 0.0
        %431 = vmatpush1.msra.mxu0 %v401
        %432 = vmatprep.subr.mxu0 0.0
        %433 = vmatpush1.msra.mxu0 %v402
        %434 = vmatprep.subr.mxu0 0.0
        %435 = vmatpush1.msra.mxu0 %v403
        %436 = vmatprep.subr.mxu0 0.0
        %437 = vmatpush1.msra.mxu0 0.0
        %438 = vmatprep.subr.mxu0 0.0
        %439 = vmatpush1.msra.mxu0 0.0
        %440 = vmatprep.subr.mxu0 0.0
        %441 = vmatpush1.msra.mxu0 0.0
        %442 = vmatprep.subr.mxu0 0.0
        %443 = vmatpush1.msra.mxu0 0.0
        %444 = vmatprep.subr.mxu0 0.0
        %445 = vmatpush1.msra.mxu0 0.0
        %446 = vmatprep.subr.mxu0 0.0
        %447 = vmatpush1.msra.mxu0 0.0
        %448 = vmatprep.subr.mxu0 0.0
        %449 = vmatpush1.msra.mxu0 0.0
        %450 = vmatprep.subr.mxu0 0.0
        %451 = vmatpush1.msra.mxu0 0.0
        %452 = vmatprep.subr.mxu0 0.0
        %453 = vmatpush1.msra.mxu0 0.0
        %454 = vmatprep.subr.mxu0 0.0
        %455 = vmatpush1.msra.mxu0 0.0
        %456 = vmatprep.subr.mxu0 0.0
        %457 = vmatpush1.msra.mxu0 0.0
        %458 = vmatprep.subr.mxu0 0.0
        %459 = vmatpush1.msra.mxu0 0.0
        %460 = vmatprep.subr.mxu0 0.0
        %461 = vmatpush1.msra.mxu0 0.0
        %462 = vmatprep.subr.mxu0 0.0
        %463 = vmatpush1.msra.mxu0 0.0
        %464 = vmatprep.subr.mxu0 0.0
        %465 = vmatpush1.msra.mxu0 0.0
        %466 = vmatprep.subr.mxu0 0.0
        %467 = vmatpush1.msra.mxu0 0.0
        %468 = vmatprep.mubr.f32.mxu0 0.0
        %469 = vmatmul.mubr.f32.gmra.mrb[0].mxu0 %v387
        %v470 = vpop.f32.mrb[0].mxu0
        %v471 = vadd.f32 0.0, %v470
        %v472 = vpop.f32.mrb[0].mxu0
        %473 = vdwg.mxu0
        %v474 = vxor.u32 %v471, 2147483648
        %v475 = vmul.f32 %v474, 1.442695
        %v476 = vpow.pop %v475
        %v477 = vadd.f32 %v476, 1.0
        %v478 = vrcp.pop %v477
        %v479 = vmul.f32 1.0, %v478
        %v480 = vlaneseq
        %v481 = vshrl.u32 %v480, 7
        %v482 = vsub.s32 0, %v481
        %v483 = vrot.slane %v479, %v482
        %485 = vbcast.lane.b32.xlu0 %v483, 256
        %v486 = vpop.permute.xlu0 %485
        %s488 = sor.u32 256, 8
        %489 = vbcast.lane.b32.xlu0 %v483, %s488
        %v490 = vpop.permute.xlu0 %489
        %s492 = sor.u32 256, 16
        %493 = vbcast.lane.b32.xlu0 %v483, %s492
        %v494 = vpop.permute.xlu0 %493
        %s496 = sor.u32 256, 24
        %497 = vbcast.lane.b32.xlu0 %v483, %s496
        %v498 = vpop.permute.xlu0 %497
        %s500 = sor.u32 256, 32
        %501 = vbcast.lane.b32.xlu0 %v483, %s500
        %v502 = vpop.permute.xlu0 %501
        %s504 = sor.u32 256, 40
        %505 = vbcast.lane.b32.xlu0 %v483, %s504
        %v506 = vpop.permute.xlu0 %505
        %s508 = sor.u32 256, 48
        %509 = vbcast.lane.b32.xlu0 %v483, %s508
        %v510 = vpop.permute.xlu0 %509
        %s512 = sor.u32 256, 56
        %513 = vbcast.lane.b32.xlu0 %v483, %s512
        %v514 = vpop.permute.xlu0 %513
        %v515 = vmul.f32 %v189, %v486
        %v516 = vmul.f32 %v190, %v486
        %v517 = vmul.f32 %v191, %v490
        %v518 = vmul.f32 %v192, %v490
        %v519 = vmul.f32 %v193, %v494
        %v520 = vmul.f32 %v194, %v494
        %v521 = vmul.f32 %v195, %v498
        %v522 = vmul.f32 %v196, %v498
        %v523 = vmul.f32 %v197, %v502
        %v524 = vmul.f32 %v198, %v502
        %v525 = vmul.f32 %v199, %v506
        %v526 = vmul.f32 %v200, %v506
        %v527 = vmul.f32 %v201, %v510
        %v528 = vmul.f32 %v202, %v510
        %v529 = vmul.f32 %v203, %v514
        %v530 = vmul.f32 %v204, %v514
        %531 = vst [vmem:[%s188] sm:$0xff] %v515
        %532 = vst [vmem:[%s188 + $0x8] sm:$0xff] %v516
        %533 = vst [vmem:[%s188 + $0x10] sm:$0xff] %v517
        %534 = vst [vmem:[%s188 + $0x18] sm:$0xff] %v518
        %535 = vst [vmem:[%s188 + $0x20] sm:$0xff] %v519
        %536 = vst [vmem:[%s188 + $0x28] sm:$0xff] %v520
        %537 = vst [vmem:[%s188 + $0x30] sm:$0xff] %v521
        %538 = vst [vmem:[%s188 + $0x38] sm:$0xff] %v522
        %539 = vst [vmem:[%s188 + $0x40] sm:$0xff] %v523
        %540 = vst [vmem:[%s188 + $0x48] sm:$0xff] %v524
        %541 = vst [vmem:[%s188 + $0x50] sm:$0xff] %v525
        %542 = vst [vmem:[%s188 + $0x58] sm:$0xff] %v526
        %543 = vst [vmem:[%s188 + $0x60] sm:$0xff] %v527
        %544 = vst [vmem:[%s188 + $0x68] sm:$0xff] %v528
        %545 = vst [vmem:[%s188 + $0x70] sm:$0xff] %v529
        %546 = vst [vmem:[%s188 + $0x78] sm:$0xff] %v530
        %s547 = sand.u32 %s96, 1
        %s548 = scalar_lea.sflag [#allocation4], %s547
        %s549 = sand.u32 %s96, 1
        %s550 = smul.addr %s549, 128
        %s551 = scalar_lea.vmem [#allocation5], %s550
        // Predicated region
        $region37: #{tpu_custom_call.1} parent=31 // pred_check
          %p552 = pneg %p106
        $region38: #{tpu_custom_call.1} parent=31 // pred_check_branch
          %554 = sbr.rel (%p552) target = $region40
        $region39: #{tpu_custom_call.1} parent=31 // pred_region
          %s556 = ssub.s32 2048, 2048
          %557 = vsyncadd %s548, %s556
          %s558 = smul.addr %s20, 16
          %s559 = smul.addr %s558, 128
          %s560 = scalar_lea.hbm %s3, %s559
          %s561 = sshll.u32 %s551, 4
          %s562 = int_to_ptr.vmem [resolvable:$true] %s561
          %567 = dma.vmem_to_hbm [thread:$0]  %s562, 2048, %s560, %s548, 256, 256, 16
        $region40: #{tpu_custom_call.1} parent=31 // pred_fallthru
          _
      $region32: #{tpu_custom_call.1} parent=5 // pred_fallthru
        _
      %p568 = scmp.le.s32.totalorder 2, %s15
      // Predicated region
      $region41: #{tpu_custom_call.1} parent=5 // pred_check
        %p569 = pneg %p568
      $region42: #{tpu_custom_call.1} parent=5 // pred_check_branch
        %571 = sbr.rel (%p569) target = $region44
      $region43: #{tpu_custom_call.1} parent=5 // pred_region
        %s572 = ssub.s32 %s15, 2
        // Predicated region
        $region45: #{tpu_custom_call.1} parent=43 // pred_check
          %p573 = pneg %p112
        $region46: #{tpu_custom_call.1} parent=43 // pred_check_branch
          %575 = sbr.rel (%p573) target = $region48
        $region47: #{tpu_custom_call.1} parent=43 // pred_region
          %s576 = sand.u32 %s97, 1
          %s577 = scalar_lea.sflag [#allocation4], %s576
          %s578 = sand.u32 %s97, 1
          %s579 = smul.addr %s578, 128
          %s580 = scalar_lea.vmem [#allocation5], %s579
          %581 = dma.done %s577, 2048
        $region48: #{tpu_custom_call.1} parent=43 // pred_fallthru
          _
      $region44: #{tpu_custom_call.1} parent=5 // pred_fallthru
        _
    $region6: #{tpu_custom_call.1} parent=1 // loop_footer
      %s19 = sadd.s32 1, %s15
    $region7: #{tpu_custom_call.1} parent=1 // loop_footer_branch
      %14 = sbr.rel target = $region3
    $region8: #{tpu_custom_call.1} parent=1 // loop_exit
      _
    %582 = vsyncpa [#allocation3], 1
    %s583 = scalar_lea.sflag [#allocation3], 1
    %584 = vsyncpa %s583, 1
    %585 = vsyncpa [#allocation4], 1
    %s586 = scalar_lea.sflag [#allocation4], 1
    %587 = vsyncpa %s586, 1

</llo_original>
